<compile_context>
chip_gen: v6e
topology: v6e:2x2x1
jax: 0.10.0
libtpu: 0.0.40
codegen_flags: <defaults>
</compile_context>

<pallas_src>
import math
from typing import NamedTuple, Optional

import jax
import jax.numpy as jnp
from jax.experimental import pallas as pl
from jax.experimental.pallas import tpu as pltpu


def _round_up(x, m):
    return ((x + m - 1) // m) * m


def _pad2d(a, rows, cols):
    pr, pc = rows - a.shape[0], cols - a.shape[1]
    if pr == 0 and pc == 0:
        return a
    return jnp.pad(a, ((0, pr), (0, pc)))


# ---------------------------------------------------------------------------
# Kernels
# ---------------------------------------------------------------------------

def _lora_linear_kernel(x_ref, worg_ref, b_ref, wdown_ref, wup_ref, o_ref,
                        acc_ref, lx_ref):
    """Fused tiled: org Linear + LoRA down/up (scale pre-folded into W_up).

    Grid = (m, n, k); k innermost.  acc_ref is the per-(m,n)-tile f32
    accumulator; lx_ref is the per-m-row LoRA-down f32 accumulator, computed
    only on the first n tile (j == 0) and reused for all later n tiles.
    """
    j = pl.program_id(1)
    k = pl.program_id(2)

    @pl.when(k == 0)
    def _():
        acc_ref[...] = jnp.zeros_like(acc_ref)

    @pl.when((j == 0) & (k == 0))
    def _():
        lx_ref[...] = jnp.zeros_like(lx_ref)

    x = x_ref[...]                                              # (bm, bk)
    # org Linear partial: (bm, bk) @ (bk, bn) on the MXU, no transposes.
    acc_ref[...] += jnp.dot(x, worg_ref[...],
                            preferred_element_type=jnp.float32)

    # LoRA down partial only once per m row (j == 0): (bm, bk) @ (bk, r_pad).
    @pl.when(j == 0)
    def _():
        lx_ref[...] += jnp.dot(x, wdown_ref[...],
                               preferred_element_type=jnp.float32)

    @pl.when(k == pl.num_programs(2) - 1)
    def _():
        # LoRA up once per (m, n) output tile; scale already folded into W_up.
        up = jnp.dot(lx_ref[...].astype(wup_ref.dtype), wup_ref[...],
                     preferred_element_type=jnp.float32)
        o_ref[...] = (acc_ref[...] + b_ref[...] + up).astype(o_ref.dtype)


def _plain_linear_kernel(x_ref, w_ref, b_ref, o_ref, acc_ref):
    """Tiled x @ W + b for the merged-weight inference fast path."""
    k = pl.program_id(2)

    @pl.when(k == 0)
    def _():
        acc_ref[...] = jnp.zeros_like(acc_ref)

    acc_ref[...] += jnp.dot(x_ref[...], w_ref[...],
                            preferred_element_type=jnp.float32)

    @pl.when(k == pl.num_programs(2) - 1)
    def _():
        o_ref[...] = (acc_ref[...] + b_ref[...]).astype(o_ref.dtype)


# ---------------------------------------------------------------------------
# Weight preparation (run ONCE at weight-load time; hoist out of the hot path)
# ---------------------------------------------------------------------------

class PreparedLoRALinear(NamedTuple):
    w_org_t: jax.Array                 # (Kp, Np) compute dtype (merged: W_eff^T)
    bias: jax.Array                    # (1, Np) f32
    w_down_t: Optional[jax.Array]      # (Kp, r_pad) compute dtype or None
    w_up_t: Optional[jax.Array]        # (r_pad, Np) compute dtype (scale folded) or None
    in_dim: int
    out_dim: int
    r_pad: int
    bn: int
    bk: int
    merged: bool


def prepare_lora_linear(w_org, b_org, w_down, w_up, *,
                        multiplier=1.0, alpha=1.0,
                        block_n=256, block_k=1024,
                        compute_dtype=jnp.bfloat16,
                        merge_weights=False) -> PreparedLoRALinear:
    """Transpose / pad / cast / scale-fold the weights once.

    Layouts follow torch.nn.Linear: w_org (out, in), w_down (r, in),
    w_up (out, r).  In a real deployment call this at weight-load time.
    """
    r, in_dim = w_down.shape
    out_dim = w_org.shape[0]
    # Module semantics: alpha == 0 or None -> alpha = lora_dim (no scaling).
    alpha_f = float(r) if (alpha is None or float(alpha) == 0.0) else float(alpha)
    scale_mult = float(multiplier) * (alpha_f / float(r))

    bk = min(block_k, _round_up(in_dim, 128))
    bn = min(block_n, _round_up(out_dim, 128))
    Kp = _round_up(in_dim, bk)
    Np = _round_up(out_dim, bn)
    r_pad = _round_up(max(r, 1), 128)   # full-lane LoRA rank (zero padded)

    bias = _pad2d(b_org.astype(jnp.float32).reshape(1, out_dim), 1, Np)

    if merge_weights:
        # Merge in f32 so the small LoRA delta is not lost to low-precision
        # rounding before the (single) cast to compute dtype.
        w_eff = w_org.astype(jnp.float32) + scale_mult * (
            w_up.astype(jnp.float32) @ w_down.astype(jnp.float32))
        w_org_t = _pad2d(w_eff.T, Kp, Np).astype(compute_dtype)
        return PreparedLoRALinear(w_org_t, bias, None, None,
                                  in_dim, out_dim, r_pad, bn, bk, True)

    w_org_t = _pad2d(w_org.astype(jnp.float32).T, Kp, Np).astype(compute_dtype)
    w_down_t = _pad2d(w_down.astype(jnp.float32).T, Kp, r_pad).astype(compute_dtype)
    w_up_t = _pad2d((w_up.astype(jnp.float32) * scale_mult).T,
                    r_pad, Np).astype(compute_dtype)
    return PreparedLoRALinear(w_org_t, bias, w_down_t, w_up_t,
                              in_dim, out_dim, r_pad, bn, bk, False)


# ---------------------------------------------------------------------------
# Forward
# ---------------------------------------------------------------------------

def lora_linear_forward_prepared(x, prep: PreparedLoRALinear, *,
                                 block_m=512,
                                 vmem_limit_bytes=None):
    """Pallas forward of LoRAModule (eval mode, Linear) with prepped weights."""
    in_dim, out_dim = prep.in_dim, prep.out_dim
    bk, bn, r_pad = prep.bk, prep.bn, prep.r_pad
    Kp, Np = prep.w_org_t.shape
    cdt = prep.w_org_t.dtype
    cdt_bytes = jnp.dtype(cdt).itemsize

    orig_lead = x.shape[:-1]
    x2 = x.reshape(-1, in_dim)
    M = x2.shape[0]

    bm = min(block_m, _round_up(M, 8))
    Mp = _round_up(M, bm)
    x_p = _pad2d(x2.astype(cdt), Mp, Kp)

    grid = (Mp // bm, Np // bn, Kp // bk)

    if vmem_limit_bytes is None:
        # Explicit budget: double-buffered pipeline tiles + f32 scratch + slack.
        dbuf = 2 * (bm * bk + bk * bn + bk * r_pad + r_pad * bn + bm * bn) * cdt_bytes
        dbuf += 2 * bn * 4                               # bias tiles (f32)
        scratch = bm * bn * 4 + bm * r_pad * 4           # acc + lx (f32)
        vmem_limit_bytes = min(100 * 1024 * 1024,
                               max(int(1.5 * (dbuf + scratch)) + (4 << 20),
                                   16 << 20))

    compiler_params = pltpu.CompilerParams(
        # lx caching relies on sequential (j, k) order per core, so only the m
        # axis is megacore-parallel.
        dimension_semantics=("parallel", "arbitrary", "arbitrary"),
        vmem_limit_bytes=vmem_limit_bytes)

    out_dtype = x.dtype

    if prep.merged:
        out = pl.pallas_call(
            _plain_linear_kernel,
            out_shape=jax.ShapeDtypeStruct((Mp, Np), out_dtype),
            grid_spec=pltpu.PrefetchScalarGridSpec(
                num_scalar_prefetch=0,
                grid=grid,
                in_specs=[
                    pl.BlockSpec((bm, bk), lambda i, j, k: (i, k)),   # x tile
                    pl.BlockSpec((bk, bn), lambda i, j, k: (k, j)),   # W_eff^T
                    pl.BlockSpec((1, bn), lambda i, j, k: (0, j)),    # bias
                ],
                out_specs=pl.BlockSpec((bm, bn), lambda i, j, k: (i, j)),
                scratch_shapes=[pltpu.VMEM((bm, bn), jnp.float32)],
            ),
            compiler_params=compiler_params,
        )(x_p, prep.w_org_t, prep.bias)
    else:
        out = pl.pallas_call(
            _lora_linear_kernel,
            out_shape=jax.ShapeDtypeStruct((Mp, Np), out_dtype),
            grid_spec=pltpu.PrefetchScalarGridSpec(
                num_scalar_prefetch=0,
                grid=grid,
                in_specs=[
                    pl.BlockSpec((bm, bk), lambda i, j, k: (i, k)),     # x tile
                    pl.BlockSpec((bk, bn), lambda i, j, k: (k, j)),     # W_org^T
                    pl.BlockSpec((1, bn), lambda i, j, k: (0, j)),      # bias
                    pl.BlockSpec((bk, r_pad), lambda i, j, k: (k, 0)),  # W_down^T
                    pl.BlockSpec((r_pad, bn), lambda i, j, k: (0, j)),  # W_up^T*s
                ],
                out_specs=pl.BlockSpec((bm, bn), lambda i, j, k: (i, j)),
                scratch_shapes=[
                    pltpu.VMEM((bm, bn), jnp.float32),      # org accumulator
                    pltpu.VMEM((bm, r_pad), jnp.float32),   # LoRA-down accumulator
                ],
            ),
            compiler_params=compiler_params,
        )(x_p, prep.w_org_t, prep.bias, prep.w_down_t, prep.w_up_t)

    return out[:M, :out_dim].reshape(*orig_lead, out_dim)


def lora_linear_forward(x, w_org, b_org, w_down, w_up, *,
                        multiplier=1.0, alpha=1.0,
                        block_m=512, block_n=256, block_k=1024,
                        compute_dtype=jnp.bfloat16,
                        merge_weights=False,
                        vmem_limit_bytes=None):
    """Convenience wrapper: prep + forward.  In production, hoist
    prepare_lora_linear() to weight-load time instead of calling it per step."""
    prep = prepare_lora_linear(w_org, b_org, w_down, w_up,
                               multiplier=multiplier, alpha=alpha,
                               block_n=block_n, block_k=block_k,
                               compute_dtype=compute_dtype,
                               merge_weights=merge_weights)
    return lora_linear_forward_prepared(x, prep, block_m=block_m,
                                        vmem_limit_bytes=vmem_limit_bytes)


# ---------------------------------------------------------------------------
# Reference + test harness
# ---------------------------------------------------------------------------

def _ref_forward(x, w_org, b_org, w_down, w_up, multiplier, alpha):
    """Pure-JAX reference of LoRAModule.forward (eval mode, Linear), f32."""
    r = w_down.shape[0]
    alpha_f = float(r) if (alpha is None or float(alpha) == 0.0) else float(alpha)
    scale = alpha_f / r
    hp = jax.lax.Precision.HIGHEST
    org = jnp.einsum("...h,oh->...o", x, w_org, precision=hp) + b_org
    lx = jnp.einsum("...h,rh->...r", x, w_down, precision=hp)
    up = jnp.einsum("...r,or->...o", lx, w_up, precision=hp)
    return org + up * multiplier * scale


def _make_inputs(key, B, S, H, OUT, R):
    kx, kw, kb, kd, ku = jax.random.split(key, 5)
    x = jax.random.normal(kx, (B, S, H), dtype=jnp.float32)
    w_org = jax.random.normal(kw, (OUT, H), dtype=jnp.float32) / math.sqrt(H)
    b_org = jax.random.normal(kb, (OUT,), dtype=jnp.float32) * 0.5
    # lora_down: kaiming_uniform_(a=sqrt(5)) == uniform(+-1/sqrt(fan_in))
    bound = 1.0 / math.sqrt(H)
    w_down = jax.random.uniform(kd, (R, H), minval=-bound, maxval=bound,
                                dtype=jnp.float32)
    # lora_up is zeros_ at init; use nonzero values so the LoRA path actually
    # contributes to the output (semantics unchanged).
    w_up = jax.random.normal(ku, (OUT, R), dtype=jnp.float32) * 0.1
    return x, w_org, b_org, w_down, w_up


def _check(name, out, ref, atol):
    err = float(jnp.max(jnp.abs(out.astype(jnp.float32) - ref)))
    assert err <= atol, f"{name}: max abs err {err} > {atol}"


if __name__ == "__main__":
    key = jax.random.PRNGKey(0)
    k1, k2 = jax.random.split(key, 2)

    # --- Test 1: small shapes, f32 compute, single tile -------------------
    B, S, H, OUT, R = 2, 8, 32, 32, 4
    x, w_org, b_org, w_down, w_up = _make_inputs(k1, B, S, H, OUT, R)
    out = lora_linear_forward(x, w_org, b_org, w_down, w_up,
                              multiplier=1.0, alpha=1.0,
                              compute_dtype=jnp.float32)
    out = jax.block_until_ready(out)
    ref = _ref_forward(x, w_org, b_org, w_down, w_up, 1.0, 1.0)
    assert out.shape == (B, S, OUT), out.shape
    _check("test1", out, ref, atol=2e-2)

    # --- Test 2: non-aligned dims, multi-step (m, n, k) grid, lx caching ---
    B2, S2, H2, OUT2, R2 = 2, 7, 200, 300, 4
    ALPHA2, MULT2 = 8.0, 0.75
    x2, w_org2, b_org2, w_down2, w_up2 = _make_inputs(k2, B2, S2, H2, OUT2, R2)
    out2 = lora_linear_forward(x2, w_org2, b_org2, w_down2, w_up2,
                               multiplier=MULT2, alpha=ALPHA2,
                               block_m=8, block_n=128, block_k=128,
                               compute_dtype=jnp.float32)
    out2 = jax.block_until_ready(out2)
    ref2 = _ref_forward(x2, w_org2, b_org2, w_down2, w_up2, MULT2, ALPHA2)
    assert out2.shape == (B2, S2, OUT2), out2.shape
    _check("test2", out2, ref2, atol=2e-2)

    # --- Test 3: bf16 compute path (default tiles), prep hoisted ----------
    prep_bf16 = prepare_lora_linear(w_org2, b_org2, w_down2, w_up2,
                                    multiplier=MULT2, alpha=ALPHA2,
                                    compute_dtype=jnp.bfloat16)
    out3 = lora_linear_forward_prepared(x2, prep_bf16)
    out3 = jax.block_until_ready(out3)
    assert out3.shape == (B2, S2, OUT2), out3.shape
    _check("test3", out3, ref2, atol=6e-2)

    # --- Test 4: merged-weight inference fast path (f32) -------------------
    out4 = lora_linear_forward(x2, w_org2, b_org2, w_down2, w_up2,
                               multiplier=MULT2, alpha=ALPHA2,
                               block_m=8, block_n=128, block_k=128,
                               compute_dtype=jnp.float32,
                               merge_weights=True)
    out4 = jax.block_until_ready(out4)
    _check("test4", out4, ref2, atol=2e-2)

    print("KERNEL_OK")
</pallas_src>

<mosaic_0001>
module attributes {stable_mosaic.version = 11 : i64} {
  func.func @_lora_linear_kernel(%arg0: i32, %arg1: i32, %arg2: i32, %arg3: memref<16x128xf32, #tpu.memory_space<vmem>>, %arg4: memref<128x128xf32, #tpu.memory_space<vmem>>, %arg5: memref<1x128xf32, #tpu.memory_space<vmem>>, %arg6: memref<128x128xf32, #tpu.memory_space<vmem>>, %arg7: memref<128x128xf32, #tpu.memory_space<vmem>>, %arg8: memref<16x128xf32, #tpu.memory_space<vmem>>, %arg9: memref<16x128xf32, #tpu.memory_space<vmem>>, %arg10: memref<16x128xf32, #tpu.memory_space<vmem>>) attributes {dimension_semantics = [#tpu.dimension_semantics<parallel>, #tpu.dimension_semantics<arbitrary>, #tpu.dimension_semantics<arbitrary>], iteration_bounds = array<i64: 1, 1, 1>, scalar_prefetch = 0 : i64, scratch_operands = 2 : i64, tpu.core_type = #tpu.core_type<tc>, window_params = [{transform_indices = @transform_0, window_bounds = array<i64: 16, 128>}, {transform_indices = @transform_1, window_bounds = array<i64: 128, 128>}, {transform_indices = @transform_2, window_bounds = array<i64: 1, 128>}, {transform_indices = @transform_3, window_bounds = array<i64: 128, 128>}, {transform_indices = @transform_4, window_bounds = array<i64: 128, 128>}, {transform_indices = @transform_5, window_bounds = array<i64: 16, 128>}]} {
    %c0_i32 = arith.constant 0 : i32
    %0 = arith.cmpi eq, %arg2, %c0_i32 : i32
    %1 = arith.extui %0 : i1 to i32
    %c0_i32_0 = arith.constant 0 : i32
    %2 = arith.cmpi ne, %1, %c0_i32_0 : i32
    scf.if %2 {
      %cst_15 = arith.constant 0.000000e+00 : f32
      %20 = vector.broadcast %cst_15 : f32 to vector<16x128xf32>
      %c0_16 = arith.constant 0 : index
      %c0_17 = arith.constant 0 : index
      %21 = vector.load %arg9[%c0_16, %c0_17] : memref<16x128xf32, #tpu.memory_space<vmem>>, vector<16x128xf32>
      tpu.vector_store %arg9[%c0_16, %c0_17], %20 {strides = array<i32>} : memref<16x128xf32, #tpu.memory_space<vmem>>, vector<16x128xf32>,
    } else {
    }
    %c0_i32_1 = arith.constant 0 : i32
    %3 = arith.cmpi eq, %arg1, %c0_i32_1 : i32
    %c0_i32_2 = arith.constant 0 : i32
    %4 = arith.cmpi eq, %arg2, %c0_i32_2 : i32
    %5 = arith.andi %3, %4 : i1
    %6 = arith.extui %5 : i1 to i32
    %c0_i32_3 = arith.constant 0 : i32
    %7 = arith.cmpi ne, %6, %c0_i32_3 : i32
    scf.if %7 {
      %cst_15 = arith.constant 0.000000e+00 : f32
      %20 = vector.broadcast %cst_15 : f32 to vector<16x128xf32>
      %c0_16 = arith.constant 0 : index
      %c0_17 = arith.constant 0 : index
      %21 = vector.load %arg10[%c0_16, %c0_17] : memref<16x128xf32, #tpu.memory_space<vmem>>, vector<16x128xf32>
      tpu.vector_store %arg10[%c0_16, %c0_17], %20 {strides = array<i32>} : memref<16x128xf32, #tpu.memory_space<vmem>>, vector<16x128xf32>,
    } else {
    }
    %c0 = arith.constant 0 : index
    %c0_4 = arith.constant 0 : index
    %8 = vector.load %arg3[%c0, %c0_4] : memref<16x128xf32, #tpu.memory_space<vmem>>, vector<16x128xf32>
    %c0_5 = arith.constant 0 : index
    %c0_6 = arith.constant 0 : index
    %9 = vector.load %arg9[%c0_5, %c0_6] : memref<16x128xf32, #tpu.memory_space<vmem>>, vector<16x128xf32>
    %c0_7 = arith.constant 0 : index
    %c0_8 = arith.constant 0 : index
    %10 = vector.load %arg4[%c0_7, %c0_8] : memref<128x128xf32, #tpu.memory_space<vmem>>, vector<128x128xf32>
    %cst = arith.constant dense<0.000000e+00> : vector<16x128xf32>
    %11 = tpu.matmul %8, %10, %cst {dimension_numbers = #tpu.dot_dimension_numbers<[1], [0], [0], [1], [0, 0, 1, 1], [], []>} : vector<16x128xf32>, vector<128x128xf32>, vector<16x128xf32> -> vector<16x128xf32>
    %12 = arith.addf %9, %11 : vector<16x128xf32>
    %c0_9 = arith.constant 0 : index
    %c0_10 = arith.constant 0 : index
    %13 = vector.load %arg9[%c0_9, %c0_10] : memref<16x128xf32, #tpu.memory_space<vmem>>, vector<16x128xf32>
    tpu.vector_store %arg9[%c0_9, %c0_10], %12 {strides = array<i32>} : memref<16x128xf32, #tpu.memory_space<vmem>>, vector<16x128xf32>,
    %c0_i32_11 = arith.constant 0 : i32
    %14 = arith.cmpi eq, %arg1, %c0_i32_11 : i32
    %15 = arith.extui %14 : i1 to i32
    %c0_i32_12 = arith.constant 0 : i32
    %16 = arith.cmpi ne, %15, %c0_i32_12 : i32
    scf.if %16 {
      %c0_15 = arith.constant 0 : index
      %c0_16 = arith.constant 0 : index
      %20 = vector.load %arg10[%c0_15, %c0_16] : memref<16x128xf32, #tpu.memory_space<vmem>>, vector<16x128xf32>
      %c0_17 = arith.constant 0 : index
      %c0_18 = arith.constant 0 : index
      %21 = vector.load %arg6[%c0_17, %c0_18] : memref<128x128xf32, #tpu.memory_space<vmem>>, vector<128x128xf32>
      %cst_19 = arith.constant dense<0.000000e+00> : vector<16x128xf32>
      %22 = tpu.matmul %8, %21, %cst_19 {dimension_numbers = #tpu.dot_dimension_numbers<[1], [0], [0], [1], [0, 0, 1, 1], [], []>} : vector<16x128xf32>, vector<128x128xf32>, vector<16x128xf32> -> vector<16x128xf32>
      %23 = arith.addf %20, %22 : vector<16x128xf32>
      %c0_20 = arith.constant 0 : index
      %c0_21 = arith.constant 0 : index
      %24 = vector.load %arg10[%c0_20, %c0_21] : memref<16x128xf32, #tpu.memory_space<vmem>>, vector<16x128xf32>
      tpu.vector_store %arg10[%c0_20, %c0_21], %23 {strides = array<i32>} : memref<16x128xf32, #tpu.memory_space<vmem>>, vector<16x128xf32>,
    } else {
    }
    %c0_i32_13 = arith.constant 0 : i32
    %17 = arith.cmpi eq, %arg2, %c0_i32_13 : i32
    %18 = arith.extui %17 : i1 to i32
    %c0_i32_14 = arith.constant 0 : i32
    %19 = arith.cmpi ne, %18, %c0_i32_14 : i32
    scf.if %19 {
      %c0_15 = arith.constant 0 : index
      %c0_16 = arith.constant 0 : index
      %20 = vector.load %arg10[%c0_15, %c0_16] : memref<16x128xf32, #tpu.memory_space<vmem>>, vector<16x128xf32>
      %c0_17 = arith.constant 0 : index
      %c0_18 = arith.constant 0 : index
      %21 = vector.load %arg7[%c0_17, %c0_18] : memref<128x128xf32, #tpu.memory_space<vmem>>, vector<128x128xf32>
      %cst_19 = arith.constant dense<0.000000e+00> : vector<16x128xf32>
      %22 = tpu.matmul %20, %21, %cst_19 {dimension_numbers = #tpu.dot_dimension_numbers<[1], [0], [0], [1], [0, 0, 1, 1], [], []>} : vector<16x128xf32>, vector<128x128xf32>, vector<16x128xf32> -> vector<16x128xf32>
      %c0_20 = arith.constant 0 : index
      %c0_21 = arith.constant 0 : index
      %23 = vector.load %arg9[%c0_20, %c0_21] : memref<16x128xf32, #tpu.memory_space<vmem>>, vector<16x128xf32>
      %c0_22 = arith.constant 0 : index
      %c0_23 = arith.constant 0 : index
      %24 = vector.load %arg5[%c0_22, %c0_23] : memref<1x128xf32, #tpu.memory_space<vmem>>, vector<1x128xf32>
      %25 = vector.broadcast %24 : vector<1x128xf32> to vector<16x128xf32>
      %26 = arith.addf %23, %25 : vector<16x128xf32>
      %27 = arith.addf %26, %22 : vector<16x128xf32>
      %c0_24 = arith.constant 0 : index
      %c0_25 = arith.constant 0 : index
      %28 = vector.load %arg8[%c0_24, %c0_25] : memref<16x128xf32, #tpu.memory_space<vmem>>, vector<16x128xf32>
      tpu.vector_store %arg8[%c0_24, %c0_25], %27 {strides = array<i32>} : memref<16x128xf32, #tpu.memory_space<vmem>>, vector<16x128xf32>,
    } else {
    }
    return
  }
  func.func @transform_0(%arg0: i32, %arg1: i32, %arg2: i32) -> (i32, i32) {
    %c0_i32 = arith.constant 0 : i32
    return %arg0, %arg2 : i32, i32
  }
  func.func @transform_1(%arg0: i32, %arg1: i32, %arg2: i32) -> (i32, i32) {
    %c0_i32 = arith.constant 0 : i32
    return %arg2, %arg1 : i32, i32
  }
  func.func @transform_2(%arg0: i32, %arg1: i32, %arg2: i32) -> (i32, i32) {
    %c0_i32 = arith.constant 0 : i32
    %c0_i32_0 = arith.constant 0 : i32
    return %c0_i32, %arg1 : i32, i32
  }
  func.func @transform_3(%arg0: i32, %arg1: i32, %arg2: i32) -> (i32, i32) {
    %c0_i32 = arith.constant 0 : i32
    %c0_i32_0 = arith.constant 0 : i32
    return %arg2, %c0_i32 : i32, i32
  }
  func.func @transform_4(%arg0: i32, %arg1: i32, %arg2: i32) -> (i32, i32) {
    %c0_i32 = arith.constant 0 : i32
    %c0_i32_0 = arith.constant 0 : i32
    return %c0_i32, %arg1 : i32, i32
  }
  func.func @transform_5(%arg0: i32, %arg1: i32, %arg2: i32) -> (i32, i32) {
    %c0_i32 = arith.constant 0 : i32
    return %arg0, %arg1 : i32, i32
  }
}

</mosaic_0001>

<llo_original>
// kernel: tpu_custom_call.1
$region0: #{tpu_custom_call.1}
  #allocation0 [shape = 'u32[]', space=smem, size = 0x4, offset = 0x4, fixed_abs, tag = 'smem constant byte address 0x4 - core index']
  #allocation1 [shape = 'u32[144,128]{1,0:T(1,128)}', space=vmem, size = 0x12000, scoped, tag = 'internal scratch']
  #allocation2 [shape = 'f32[16,128]{1,0:T(8,128)}', space=vmem, size = 0x2000, scoped, tag = 'scratch operand']
  #allocation3 [shape = 'f32[16,128]{1,0:T(8,128)}', space=vmem, size = 0x2000, scoped, tag = 'scratch operand']
  %s0 = inlined_call_operand.hbm [shape: f32[16,128], index: 0, kind: input, shape index: {}]
  %s1 = inlined_call_operand.hbm [shape: f32[128,128], index: 1, kind: input, shape index: {}]
  %s2 = inlined_call_operand.vmem [shape: f32[1,128], index: 2, kind: input, shape index: {}]
  %s3 = inlined_call_operand.hbm [shape: f32[128,128], index: 3, kind: input, shape index: {}]
  %s4 = inlined_call_operand.hbm [shape: f32[128,128], index: 4, kind: input, shape index: {}]
  %s5 = inlined_call_operand.hbm [shape: f32[16,128], index: 5, kind: output, shape index: {}]
  %s6 = sld [smem:[#allocation0]]
  $region62: #{tpu_custom_call.1} parent=0
    _
  %s8 = ssub.s32 1, %s6
  %s9 = scalar_select 0, %s8, %s6
  $region1: #{tpu_custom_call.1} parent=0
    #allocation4 [shape = 'u8[8192]{0}', space=vmem, size = 0x2000, scoped, tag = 'input window, operand 0, single buffered']
    #allocation5 [shape = 's32[1]{0}', space=sflag, size = 0x4, scoped, tag = 'scoped memory for tpu_custom_call.1']
    #allocation6 [shape = 's32[1]{0}', space=sflag, size = 0x4, scoped, tag = 'scoped memory for tpu_custom_call.1']
    #allocation7 [shape = 'u8[65536]{0}', space=vmem, size = 0x10000, scoped, tag = 'input window, operand 1, single buffered']
    #allocation8 [shape = 's32[1]{0}', space=sflag, size = 0x4, scoped, tag = 'scoped memory for tpu_custom_call.1']
    #allocation9 [shape = 'u8[65536]{0}', space=vmem, size = 0x10000, scoped, tag = 'input window, operand 3, single buffered']
    #allocation10 [shape = 'u8[65536]{0}', space=vmem, size = 0x10000, scoped, tag = 'input window, operand 4, single buffered']
    #allocation11 [shape = 's32[1]{0}', space=sflag, size = 0x4, scoped, tag = 'scoped memory for tpu_custom_call.1']
    #allocation12 [shape = 'u8[8192]{0}', space=vmem, size = 0x2000, scoped, tag = 'output window, operand 0, single buffered']
    %10 = vsyncpa [#allocation5], 0
    %11 = vsyncpa [#allocation8], 0
    %12 = vsyncpa [#allocation11], 0
    %13 = vsyncpa [#allocation6], 0
    // Predicated region
    $region2: #{tpu_custom_call.1} parent=1 // pred_check
      _
    $region3: #{tpu_custom_call.1} parent=1 // pred_check_branch
      %15 = sbr.rel (0) target = $region5
    $region4: #{tpu_custom_call.1} parent=1 // pred_region
      %s17 = ssub.s32 256, 256
      %18 = vsyncadd [#allocation5], %s17
      %s19 = sshll.u32 [#allocation4], 4
      %s20 = int_to_ptr.vmem [resolvable:$true] %s19
      %25 = dma.hbm_to_vmem [thread:$0]  %s0, 256, %s20, [#allocation5], 128, 128, 8
    $region5: #{tpu_custom_call.1} parent=1 // pred_fallthru
      _
    // Predicated region
    $region6: #{tpu_custom_call.1} parent=1 // pred_check
      _
    $region7: #{tpu_custom_call.1} parent=1 // pred_check_branch
      %27 = sbr.rel (0) target = $region9
    $region8: #{tpu_custom_call.1} parent=1 // pred_region
      %s29 = ssub.s32 2048, 2048
      %30 = vsyncadd [#allocation8], %s29
      %s31 = sshll.u32 [#allocation7], 4
      %s32 = int_to_ptr.vmem [resolvable:$true] %s31
      %37 = dma.hbm_to_vmem [thread:$0]  %s1, 2048, %s32, [#allocation8], 128, 128, 8
    $region9: #{tpu_custom_call.1} parent=1 // pred_fallthru
      _
    // Predicated region
    $region10: #{tpu_custom_call.1} parent=1 // pred_check
      _
    $region11: #{tpu_custom_call.1} parent=1 // pred_check_branch
      %39 = sbr.rel (0) target = $region13
    $region12: #{tpu_custom_call.1} parent=1 // pred_region
      _
    $region13: #{tpu_custom_call.1} parent=1 // pred_fallthru
      _
    // Predicated region
    $region14: #{tpu_custom_call.1} parent=1 // pred_check
      _
    $region15: #{tpu_custom_call.1} parent=1 // pred_check_branch
      %41 = sbr.rel (0) target = $region17
    $region16: #{tpu_custom_call.1} parent=1 // pred_region
      %s43 = ssub.s32 2048, 2048
      %44 = vsyncadd [#allocation8], %s43
      %s45 = sshll.u32 [#allocation9], 4
      %s46 = int_to_ptr.vmem [resolvable:$true] %s45
      %51 = dma.hbm_to_vmem [thread:$0]  %s3, 2048, %s46, [#allocation8], 128, 128, 8
    $region17: #{tpu_custom_call.1} parent=1 // pred_fallthru
      _
    // Predicated region
    $region18: #{tpu_custom_call.1} parent=1 // pred_check
      _
    $region19: #{tpu_custom_call.1} parent=1 // pred_check_branch
      %53 = sbr.rel (0) target = $region21
    $region20: #{tpu_custom_call.1} parent=1 // pred_region
      %s55 = ssub.s32 2048, 2048
      %56 = vsyncadd [#allocation11], %s55
      %s57 = sshll.u32 [#allocation10], 4
      %s58 = int_to_ptr.vmem [resolvable:$true] %s57
      %63 = dma.hbm_to_vmem [thread:$0]  %s4, 2048, %s58, [#allocation11], 128, 128, 8
    $region21: #{tpu_custom_call.1} parent=1 // pred_fallthru
      _
    // Predicated region
    $region22: #{tpu_custom_call.1} parent=1 // pred_check
      _
    $region23: #{tpu_custom_call.1} parent=1 // pred_check_branch
      %65 = sbr.rel (0) target = $region25
    $region24: #{tpu_custom_call.1} parent=1 // pred_region
      %66 = dma.done [#allocation5], 256
    $region25: #{tpu_custom_call.1} parent=1 // pred_fallthru
      _
    // Predicated region
    $region26: #{tpu_custom_call.1} parent=1 // pred_check
      _
    $region27: #{tpu_custom_call.1} parent=1 // pred_check_branch
      %68 = sbr.rel (0) target = $region29
    $region28: #{tpu_custom_call.1} parent=1 // pred_region
      %69 = dma.done [#allocation8], 2048
    $region29: #{tpu_custom_call.1} parent=1 // pred_fallthru
      _
    // Predicated region
    $region30: #{tpu_custom_call.1} parent=1 // pred_check
      _
    $region31: #{tpu_custom_call.1} parent=1 // pred_check_branch
      %71 = sbr.rel (0) target = $region33
    $region32: #{tpu_custom_call.1} parent=1 // pred_region
      %72 = dma.done [#allocation8], 2048
    $region33: #{tpu_custom_call.1} parent=1 // pred_fallthru
      _
    // Predicated region
    $region34: #{tpu_custom_call.1} parent=1 // pred_check
      _
    $region35: #{tpu_custom_call.1} parent=1 // pred_check_branch
      %74 = sbr.rel (0) target = $region37
    $region36: #{tpu_custom_call.1} parent=1 // pred_region
      %75 = dma.done [#allocation11], 2048
    $region37: #{tpu_custom_call.1} parent=1 // pred_fallthru
      _
    %p76 = scmp.eq.s32.totalorder 0, 0
    // Predicated region
    $region38: #{tpu_custom_call.1} parent=1 // pred_check
      %p77 = pneg %p76
    $region39: #{tpu_custom_call.1} parent=1 // pred_check_branch
      %79 = sbr.rel (%p77) target = $region41
    $region40: #{tpu_custom_call.1} parent=1 // pred_region
      %80 = vst [vmem:[#allocation2] sm:$0xff] 0.0
      %81 = vst [vmem:[#allocation2 + $0x8] sm:$0xff] 0.0
    $region41: #{tpu_custom_call.1} parent=1 // pred_fallthru
      _
    %p82 = scmp.eq.s32.totalorder 0, 0
    %p83 = pnand %p82, %p76
    %p84 = pneg %p83
    // Predicated region
    $region42: #{tpu_custom_call.1} parent=1 // pred_check
      _
    $region43: #{tpu_custom_call.1} parent=1 // pred_check_branch
      %86 = sbr.rel (%p83) target = $region45
    $region44: #{tpu_custom_call.1} parent=1 // pred_region
      %87 = vst [vmem:[#allocation3] sm:$0xff] 0.0
      %88 = vst [vmem:[#allocation3 + $0x8] sm:$0xff] 0.0
    $region45: #{tpu_custom_call.1} parent=1 // pred_fallthru
      _
    %v89 = vld [vmem:[#allocation4] sm:$0xff]
    %v90 = vld [vmem:[#allocation4 + $0x8] sm:$0xff]
    %v91 = vld [vmem:[#allocation2] sm:$0xff]
    %v92 = vld [vmem:[#allocation2 + $0x8] sm:$0xff]
    %v93 = vld [vmem:[#allocation7] sm:$0xff]
    %v94 = vld [vmem:[#allocation7 + $0x8] sm:$0xff]
    %v95 = vld [vmem:[#allocation7 + $0x10] sm:$0xff]
    %v96 = vld [vmem:[#allocation7 + $0x18] sm:$0xff]
    %v97 = vld [vmem:[#allocation7 + $0x20] sm:$0xff]
    %v98 = vld [vmem:[#allocation7 + $0x28] sm:$0xff]
    %v99 = vld [vmem:[#allocation7 + $0x30] sm:$0xff]
    %v100 = vld [vmem:[#allocation7 + $0x38] sm:$0xff]
    %v101 = vld [vmem:[#allocation7 + $0x40] sm:$0xff]
    %v102 = vld [vmem:[#allocation7 + $0x48] sm:$0xff]
    %v103 = vld [vmem:[#allocation7 + $0x50] sm:$0xff]
    %v104 = vld [vmem:[#allocation7 + $0x58] sm:$0xff]
    %v105 = vld [vmem:[#allocation7 + $0x60] sm:$0xff]
    %v106 = vld [vmem:[#allocation7 + $0x68] sm:$0xff]
    %v107 = vld [vmem:[#allocation7 + $0x70] sm:$0xff]
    %v108 = vld [vmem:[#allocation7 + $0x78] sm:$0xff]
    %109 = vmatprep.subr.mxu0 0.0
    %110 = vmatpush1.msra.mxu0 %v108
    %111 = vmatprep.subr.mxu0 0.0
    %112 = vmatpush1.msra.mxu0 %v107
    %113 = vmatprep.subr.mxu0 0.0
    %114 = vmatpush1.msra.mxu0 %v106
    %115 = vmatprep.subr.mxu0 0.0
    %116 = vmatpush1.msra.mxu0 %v105
    %117 = vmatprep.subr.mxu0 0.0
    %118 = vmatpush1.msra.mxu0 %v104
    %119 = vmatprep.subr.mxu0 0.0
    %120 = vmatpush1.msra.mxu0 %v103
    %121 = vmatprep.subr.mxu0 0.0
    %122 = vmatpush1.msra.mxu0 %v102
    %123 = vmatprep.subr.mxu0 0.0
    %124 = vmatpush1.msra.mxu0 %v101
    %125 = vmatprep.subr.mxu0 0.0
    %126 = vmatpush1.msra.mxu0 %v100
    %127 = vmatprep.subr.mxu0 0.0
    %128 = vmatpush1.msra.mxu0 %v99
    %129 = vmatprep.subr.mxu0 0.0
    %130 = vmatpush1.msra.mxu0 %v98
    %131 = vmatprep.subr.mxu0 0.0
    %132 = vmatpush1.msra.mxu0 %v97
    %133 = vmatprep.subr.mxu0 0.0
    %134 = vmatpush1.msra.mxu0 %v96
    %135 = vmatprep.subr.mxu0 0.0
    %136 = vmatpush1.msra.mxu0 %v95
    %137 = vmatprep.subr.mxu0 0.0
    %138 = vmatpush1.msra.mxu0 %v94
    %139 = vmatprep.subr.mxu0 0.0
    %140 = vmatpush1.msra.mxu0 %v93
    %141 = vmatprep.subr.mxu0 0.0
    %142 = vmatpush2.msra.mxu0 0.0
    %143 = vmatprep.subr.mxu0 0.0
    %144 = vmatpush2.msra.mxu0 0.0
    %145 = vmatprep.subr.mxu0 0.0
    %146 = vmatpush2.msra.mxu0 0.0
    %147 = vmatprep.subr.mxu0 0.0
    %148 = vmatpush2.msra.mxu0 0.0
    %149 = vmatprep.subr.mxu0 0.0
    %150 = vmatpush2.msra.mxu0 0.0
    %151 = vmatprep.subr.mxu0 0.0
    %152 = vmatpush2.msra.mxu0 0.0
    %153 = vmatprep.subr.mxu0 0.0
    %154 = vmatpush2.msra.mxu0 0.0
    %155 = vmatprep.subr.mxu0 0.0
    %156 = vmatpush2.msra.mxu0 0.0
    %157 = vmatprep.subr.mxu0 0.0
    %158 = vmatpush2.msra.mxu0 0.0
    %159 = vmatprep.subr.mxu0 0.0
    %160 = vmatpush2.msra.mxu0 0.0
    %161 = vmatprep.subr.mxu0 0.0
    %162 = vmatpush2.msra.mxu0 0.0
    %163 = vmatprep.subr.mxu0 0.0
    %164 = vmatpush2.msra.mxu0 0.0
    %165 = vmatprep.subr.mxu0 0.0
    %166 = vmatpush2.msra.mxu0 0.0
    %167 = vmatprep.subr.mxu0 0.0
    %168 = vmatpush2.msra.mxu0 0.0
    %169 = vmatprep.subr.mxu0 0.0
    %170 = vmatpush2.msra.mxu0 0.0
    %171 = vmatprep.subr.mxu0 0.0
    %172 = vmatpush2.msra.mxu0 0.0
    %173 = vmatprep.mubr.f32.mxu0 0.0
    %174 = vmatmul.mubr.f32.gmra.mxu0 %v89
    %v175 = vpop.f32.mrf.mxu0
    %v176 = vadd.f32 0.0, %v175
    %v177 = vpop.f32.mrf.mxu0
    %178 = vmatprep.mubr.f32.mxu0 0.0
    %179 = vmatmul.mubr.f32.gmra.mxu0 %v90
    %v180 = vpop.f32.mrf.mxu0
    %v181 = vadd.f32 0.0, %v180
    %v182 = vpop.f32.mrf.mxu0
    %183 = vdwg.mxu0
    %v184 = vadd.f32 %v91, %v176
    %v185 = vadd.f32 %v92, %v181
    %186 = vst [vmem:[#allocation2] sm:$0xff] %v184
    %187 = vst [vmem:[#allocation2 + $0x8] sm:$0xff] %v185
    // Predicated region
    $region46: #{tpu_custom_call.1} parent=1 // pred_check
      %p188 = pneg %p82
    $region47: #{tpu_custom_call.1} parent=1 // pred_check_branch
      %190 = sbr.rel (%p188) target = $region49
    $region48: #{tpu_custom_call.1} parent=1 // pred_region
      %v191 = vld [vmem:[#allocation3] sm:$0xff]
      %v192 = vld [vmem:[#allocation3 + $0x8] sm:$0xff]
      %v193 = vld [vmem:[#allocation9] sm:$0xff]
      %v194 = vld [vmem:[#allocation9 + $0x8] sm:$0xff]
      %v195 = vld [vmem:[#allocation9 + $0x10] sm:$0xff]
      %v196 = vld [vmem:[#allocation9 + $0x18] sm:$0xff]
      %v197 = vld [vmem:[#allocation9 + $0x20] sm:$0xff]
      %v198 = vld [vmem:[#allocation9 + $0x28] sm:$0xff]
      %v199 = vld [vmem:[#allocation9 + $0x30] sm:$0xff]
      %v200 = vld [vmem:[#allocation9 + $0x38] sm:$0xff]
      %v201 = vld [vmem:[#allocation9 + $0x40] sm:$0xff]
      %v202 = vld [vmem:[#allocation9 + $0x48] sm:$0xff]
      %v203 = vld [vmem:[#allocation9 + $0x50] sm:$0xff]
      %v204 = vld [vmem:[#allocation9 + $0x58] sm:$0xff]
      %v205 = vld [vmem:[#allocation9 + $0x60] sm:$0xff]
      %v206 = vld [vmem:[#allocation9 + $0x68] sm:$0xff]
      %v207 = vld [vmem:[#allocation9 + $0x70] sm:$0xff]
      %v208 = vld [vmem:[#allocation9 + $0x78] sm:$0xff]
      %209 = vmatprep.subr.mxu0 0.0
      %210 = vmatpush1.msra.mxu0 %v208
      %211 = vmatprep.subr.mxu0 0.0
      %212 = vmatpush1.msra.mxu0 %v207
      %213 = vmatprep.subr.mxu0 0.0
      %214 = vmatpush1.msra.mxu0 %v206
      %215 = vmatprep.subr.mxu0 0.0
      %216 = vmatpush1.msra.mxu0 %v205
      %217 = vmatprep.subr.mxu0 0.0
      %218 = vmatpush1.msra.mxu0 %v204
      %219 = vmatprep.subr.mxu0 0.0
      %220 = vmatpush1.msra.mxu0 %v203
      %221 = vmatprep.subr.mxu0 0.0
      %222 = vmatpush1.msra.mxu0 %v202
      %223 = vmatprep.subr.mxu0 0.0
      %224 = vmatpush1.msra.mxu0 %v201
      %225 = vmatprep.subr.mxu0 0.0
      %226 = vmatpush1.msra.mxu0 %v200
      %227 = vmatprep.subr.mxu0 0.0
      %228 = vmatpush1.msra.mxu0 %v199
      %229 = vmatprep.subr.mxu0 0.0
      %230 = vmatpush1.msra.mxu0 %v198
      %231 = vmatprep.subr.mxu0 0.0
      %232 = vmatpush1.msra.mxu0 %v197
      %233 = vmatprep.subr.mxu0 0.0
      %234 = vmatpush1.msra.mxu0 %v196
      %235 = vmatprep.subr.mxu0 0.0
      %236 = vmatpush1.msra.mxu0 %v195
      %237 = vmatprep.subr.mxu0 0.0
      %238 = vmatpush1.msra.mxu0 %v194
      %239 = vmatprep.subr.mxu0 0.0
      %240 = vmatpush1.msra.mxu0 %v193
      %241 = vmatprep.subr.mxu0 0.0
      %242 = vmatpush2.msra.mxu0 0.0
      %243 = vmatprep.subr.mxu0 0.0
      %244 = vmatpush2.msra.mxu0 0.0
      %245 = vmatprep.subr.mxu0 0.0
      %246 = vmatpush2.msra.mxu0 0.0
      %247 = vmatprep.subr.mxu0 0.0
      %248 = vmatpush2.msra.mxu0 0.0
      %249 = vmatprep.subr.mxu0 0.0
      %250 = vmatpush2.msra.mxu0 0.0
      %251 = vmatprep.subr.mxu0 0.0
      %252 = vmatpush2.msra.mxu0 0.0
      %253 = vmatprep.subr.mxu0 0.0
      %254 = vmatpush2.msra.mxu0 0.0
      %255 = vmatprep.subr.mxu0 0.0
      %256 = vmatpush2.msra.mxu0 0.0
      %257 = vmatprep.subr.mxu0 0.0
      %258 = vmatpush2.msra.mxu0 0.0
      %259 = vmatprep.subr.mxu0 0.0
      %260 = vmatpush2.msra.mxu0 0.0
      %261 = vmatprep.subr.mxu0 0.0
      %262 = vmatpush2.msra.mxu0 0.0
      %263 = vmatprep.subr.mxu0 0.0
      %264 = vmatpush2.msra.mxu0 0.0
      %265 = vmatprep.subr.mxu0 0.0
      %266 = vmatpush2.msra.mxu0 0.0
      %267 = vmatprep.subr.mxu0 0.0
      %268 = vmatpush2.msra.mxu0 0.0
      %269 = vmatprep.subr.mxu0 0.0
      %270 = vmatpush2.msra.mxu0 0.0
      %271 = vmatprep.subr.mxu0 0.0
      %272 = vmatpush2.msra.mxu0 0.0
      %273 = vmatprep.mubr.f32.mxu0 0.0
      %274 = vmatmul.mubr.f32.gmra.mxu0 %v89
      %v275 = vpop.f32.mrf.mxu0
      %v276 = vadd.f32 0.0, %v275
      %v277 = vpop.f32.mrf.mxu0
      %278 = vmatprep.mubr.f32.mxu0 0.0
      %279 = vmatmul.mubr.f32.gmra.mxu0 %v90
      %v280 = vpop.f32.mrf.mxu0
      %v281 = vadd.f32 0.0, %v280
      %v282 = vpop.f32.mrf.mxu0
      %283 = vdwg.mxu0
      %v284 = vadd.f32 %v191, %v276
      %v285 = vadd.f32 %v192, %v281
      %286 = vst [vmem:[#allocation3] sm:$0xff] %v284
      %287 = vst [vmem:[#allocation3 + $0x8] sm:$0xff] %v285
    $region49: #{tpu_custom_call.1} parent=1 // pred_fallthru
      _
    // Predicated region
    $region50: #{tpu_custom_call.1} parent=1 // pred_check
      %p288 = pneg %p76
    $region51: #{tpu_custom_call.1} parent=1 // pred_check_branch
      %290 = sbr.rel (%p288) target = $region53
    $region52: #{tpu_custom_call.1} parent=1 // pred_region
      %v291 = vld [vmem:[#allocation3] sm:$0xff]
      %v292 = vld [vmem:[#allocation3 + $0x8] sm:$0xff]
      %v293 = vld [vmem:[#allocation10] sm:$0xff]
      %v294 = vld [vmem:[#allocation10 + $0x8] sm:$0xff]
      %v295 = vld [vmem:[#allocation10 + $0x10] sm:$0xff]
      %v296 = vld [vmem:[#allocation10 + $0x18] sm:$0xff]
      %v297 = vld [vmem:[#allocation10 + $0x20] sm:$0xff]
      %v298 = vld [vmem:[#allocation10 + $0x28] sm:$0xff]
      %v299 = vld [vmem:[#allocation10 + $0x30] sm:$0xff]
      %v300 = vld [vmem:[#allocation10 + $0x38] sm:$0xff]
      %v301 = vld [vmem:[#allocation10 + $0x40] sm:$0xff]
      %v302 = vld [vmem:[#allocation10 + $0x48] sm:$0xff]
      %v303 = vld [vmem:[#allocation10 + $0x50] sm:$0xff]
      %v304 = vld [vmem:[#allocation10 + $0x58] sm:$0xff]
      %v305 = vld [vmem:[#allocation10 + $0x60] sm:$0xff]
      %v306 = vld [vmem:[#allocation10 + $0x68] sm:$0xff]
      %v307 = vld [vmem:[#allocation10 + $0x70] sm:$0xff]
      %v308 = vld [vmem:[#allocation10 + $0x78] sm:$0xff]
      %309 = vmatprep.subr.mxu0 0.0
      %310 = vmatpush1.msra.mxu0 %v308
      %311 = vmatprep.subr.mxu0 0.0
      %312 = vmatpush1.msra.mxu0 %v307
      %313 = vmatprep.subr.mxu0 0.0
      %314 = vmatpush1.msra.mxu0 %v306
      %315 = vmatprep.subr.mxu0 0.0
      %316 = vmatpush1.msra.mxu0 %v305
      %317 = vmatprep.subr.mxu0 0.0
      %318 = vmatpush1.msra.mxu0 %v304
      %319 = vmatprep.subr.mxu0 0.0
      %320 = vmatpush1.msra.mxu0 %v303
      %321 = vmatprep.subr.mxu0 0.0
      %322 = vmatpush1.msra.mxu0 %v302
      %323 = vmatprep.subr.mxu0 0.0
      %324 = vmatpush1.msra.mxu0 %v301
      %325 = vmatprep.subr.mxu0 0.0
      %326 = vmatpush1.msra.mxu0 %v300
      %327 = vmatprep.subr.mxu0 0.0
      %328 = vmatpush1.msra.mxu0 %v299
      %329 = vmatprep.subr.mxu0 0.0
      %330 = vmatpush1.msra.mxu0 %v298
      %331 = vmatprep.subr.mxu0 0.0
      %332 = vmatpush1.msra.mxu0 %v297
      %333 = vmatprep.subr.mxu0 0.0
      %334 = vmatpush1.msra.mxu0 %v296
      %335 = vmatprep.subr.mxu0 0.0
      %336 = vmatpush1.msra.mxu0 %v295
      %337 = vmatprep.subr.mxu0 0.0
      %338 = vmatpush1.msra.mxu0 %v294
      %339 = vmatprep.subr.mxu0 0.0
      %340 = vmatpush1.msra.mxu0 %v293
      %341 = vmatprep.subr.mxu0 0.0
      %342 = vmatpush2.msra.mxu0 0.0
      %343 = vmatprep.subr.mxu0 0.0
      %344 = vmatpush2.msra.mxu0 0.0
      %345 = vmatprep.subr.mxu0 0.0
      %346 = vmatpush2.msra.mxu0 0.0
      %347 = vmatprep.subr.mxu0 0.0
      %348 = vmatpush2.msra.mxu0 0.0
      %349 = vmatprep.subr.mxu0 0.0
      %350 = vmatpush2.msra.mxu0 0.0
      %351 = vmatprep.subr.mxu0 0.0
      %352 = vmatpush2.msra.mxu0 0.0
      %353 = vmatprep.subr.mxu0 0.0
      %354 = vmatpush2.msra.mxu0 0.0
      %355 = vmatprep.subr.mxu0 0.0
      %356 = vmatpush2.msra.mxu0 0.0
      %357 = vmatprep.subr.mxu0 0.0
      %358 = vmatpush2.msra.mxu0 0.0
      %359 = vmatprep.subr.mxu0 0.0
      %360 = vmatpush2.msra.mxu0 0.0
      %361 = vmatprep.subr.mxu0 0.0
      %362 = vmatpush2.msra.mxu0 0.0
      %363 = vmatprep.subr.mxu0 0.0
      %364 = vmatpush2.msra.mxu0 0.0
      %365 = vmatprep.subr.mxu0 0.0
      %366 = vmatpush2.msra.mxu0 0.0
      %367 = vmatprep.subr.mxu0 0.0
      %368 = vmatpush2.msra.mxu0 0.0
      %369 = vmatprep.subr.mxu0 0.0
      %370 = vmatpush2.msra.mxu0 0.0
      %371 = vmatprep.subr.mxu0 0.0
      %372 = vmatpush2.msra.mxu0 0.0
      %373 = vmatprep.mubr.f32.mxu0 0.0
      %374 = vmatmul.mubr.f32.gmra.mxu0 %v291
      %v375 = vpop.f32.mrf.mxu0
      %v376 = vadd.f32 0.0, %v375
      %v377 = vpop.f32.mrf.mxu0
      %378 = vmatprep.mubr.f32.mxu0 0.0
      %379 = vmatmul.mubr.f32.gmra.mxu0 %v292
      %v380 = vpop.f32.mrf.mxu0
      %v381 = vadd.f32 0.0, %v380
      %v382 = vpop.f32.mrf.mxu0
      %383 = vdwg.mxu0
      %v384 = vld [vmem:[#allocation2] sm:$0xff]
      %v385 = vld [vmem:[#allocation2 + $0x8] sm:$0xff]
      %v386 = vld [vmem:[%s2] sm:$0x1]
      %v388 = vlaneseq
      %v389 = vshrl.u32 %v388, 7
      %v390 = vsub.s32 0, %v389
      %v391 = vrot.slane %v386, %v390
      %v393 = vadd.f32 %v384, %v391
      %v394 = vadd.f32 %v385, %v391
      %v395 = vadd.f32 %v393, %v376
      %v396 = vadd.f32 %v394, %v381
      %397 = vst [vmem:[#allocation12] sm:$0xff] %v395
      %398 = vst [vmem:[#allocation12 + $0x8] sm:$0xff] %v396
    $region53: #{tpu_custom_call.1} parent=1 // pred_fallthru
      _
    // Predicated region
    $region54: #{tpu_custom_call.1} parent=1 // pred_check
      _
    $region55: #{tpu_custom_call.1} parent=1 // pred_check_branch
      %400 = sbr.rel (0) target = $region57
    $region56: #{tpu_custom_call.1} parent=1 // pred_region
      %s402 = ssub.s32 256, 256
      %403 = vsyncadd [#allocation6], %s402
      %s404 = sshll.u32 [#allocation12], 4
      %s405 = int_to_ptr.vmem [resolvable:$true] %s404
      %410 = dma.vmem_to_hbm [thread:$0]  %s405, 256, %s5, [#allocation6], 128, 128, 8
    $region57: #{tpu_custom_call.1} parent=1 // pred_fallthru
      _
    // Predicated region
    $region58: #{tpu_custom_call.1} parent=1 // pred_check
      _
    $region59: #{tpu_custom_call.1} parent=1 // pred_check_branch
      %412 = sbr.rel (0) target = $region61
    $region60: #{tpu_custom_call.1} parent=1 // pred_region
      %413 = dma.done [#allocation6], 256
    $region61: #{tpu_custom_call.1} parent=1 // pred_fallthru
      _
    %414 = vsyncpa [#allocation5], 1
    %415 = vsyncpa [#allocation8], 1
    %416 = vsyncpa [#allocation11], 1
    %417 = vsyncpa [#allocation6], 1

</llo_original>
